<compile_context>
chip_gen: v7x
topology: tpu7x:2x2x1
jax: 0.10.0
libtpu: 0.0.40
codegen_flags: <defaults>
</compile_context>

<pallas_src>
import functools

import jax
import jax.numpy as jnp
from jax import lax
from jax.experimental import pallas as pl
from jax.experimental.pallas import tpu as pltpu

BN_EPS = 1e-5
LEAKY_SLOPE = 0.01


def _stats_fold_kernel(x_ref, w_ref, b_ref, scale_ref, shift_ref,
                       sum_ref, sumsq_ref, *, count, eps):
    """Accumulate per-channel sum / sum-of-squares across the row grid; on the
    last step fold them with weight/bias into per-channel scale & shift."""
    @pl.when(pl.program_id(0) == 0)
    def _():
        sum_ref[...] = jnp.zeros_like(sum_ref)
        sumsq_ref[...] = jnp.zeros_like(sumsq_ref)

    x = x_ref[...].astype(jnp.float32)
    sum_ref[...] += jnp.sum(x, axis=0, keepdims=True)
    sumsq_ref[...] += jnp.sum(x * x, axis=0, keepdims=True)

    @pl.when(pl.program_id(0) == pl.num_programs(0) - 1)
    def _():
        inv_n = jnp.float32(1.0 / count)
        mean = sum_ref[...] * inv_n
        var = sumsq_ref[...] * inv_n - mean * mean      # biased var (BN forward)
        scale = w_ref[...] * lax.rsqrt(var + jnp.float32(eps))
        scale_ref[...] = scale
        shift_ref[...] = b_ref[...] - mean * scale


def _apply_kernel(x_ref, scale_ref, shift_ref, o_ref, *, slope):
    """y = leaky_relu(x * scale + shift)."""
    x = x_ref[...].astype(jnp.float32)
    y = x * scale_ref[...] + shift_ref[...]
    o_ref[...] = jnp.where(y >= 0.0, y, jnp.float32(slope) * y).astype(o_ref.dtype)


def _round_up(v, m):
    return (v + m - 1) // m * m


def _pick_row_tile(m, c_pad, target_bytes=2 * 1024 * 1024):
    """Largest row tile (multiple of 8, <=1024) fitting the per-buffer budget."""
    rows = max(8, min(1024, (target_bytes // (c_pad * 4)) // 8 * 8))
    rows = min(rows, _round_up(m, 8))
    return rows


@functools.partial(jax.jit, static_argnames=("training", "eps", "slope"))
def inplace_abn_sync_forward(x_nchw, weight, bias, running_mean, running_var,
                             training=True, eps=BN_EPS, slope=LEAKY_SLOPE):
    """NCHW in / NCHW out, matching InPlaceABNSyncWrapper.forward."""
    N, C, H, W = x_nchw.shape
    M = N * H * W
    C_pad = _round_up(max(C, 1), 128)
    rows = _pick_row_tile(M, C_pad)
    M_pad = _round_up(M, rows)
    grid_m = M_pad // rows

    # NCHW -> (M, C): channels on the lane axis.  Zero padding is harmless:
    # padded rows/channels contribute 0 to the sums and are sliced away below.
    x2d = jnp.transpose(x_nchw, (0, 2, 3, 1)).reshape(M, C).astype(jnp.float32)
    if M_pad != M or C_pad != C:
        x2d = jnp.pad(x2d, ((0, M_pad - M), (0, C_pad - C)))

    row_spec = pl.BlockSpec((rows, C_pad), lambda i: (i, 0))
    vec_spec = pl.BlockSpec((1, C_pad), lambda i: (0, 0))

    w2d = jnp.pad(weight.astype(jnp.float32).reshape(1, C),
                  ((0, 0), (0, C_pad - C)))
    b2d = jnp.pad(bias.astype(jnp.float32).reshape(1, C),
                  ((0, 0), (0, C_pad - C)))

    if training:
        # Pass 1: streaming per-channel statistics + in-kernel BN fold.
        scale2d, shift2d = pl.pallas_call(
            functools.partial(_stats_fold_kernel, count=float(M), eps=float(eps)),
            out_shape=(jax.ShapeDtypeStruct((1, C_pad), jnp.float32),
                       jax.ShapeDtypeStruct((1, C_pad), jnp.float32)),
            grid=(grid_m,),
            in_specs=[row_spec, vec_spec, vec_spec],
            out_specs=(vec_spec, vec_spec),
            scratch_shapes=[pltpu.VMEM((1, C_pad), jnp.float32),
                            pltpu.VMEM((1, C_pad), jnp.float32)],
            compiler_params=pltpu.CompilerParams(
                dimension_semantics=("arbitrary",)),
            cost_estimate=pl.CostEstimate(
                flops=3 * M_pad * C_pad,
                transcendentals=C_pad,
                bytes_accessed=(M_pad * C_pad + 4 * C_pad) * 4),
        )(x2d, w2d, b2d)
    else:
        # Eval mode: fold running statistics (tiny C-length math in plain JAX).
        mean = running_mean.astype(jnp.float32)
        var = running_var.astype(jnp.float32)
        scale = weight.astype(jnp.float32) * lax.rsqrt(var + jnp.float32(eps))
        shift = bias.astype(jnp.float32) - mean * scale
        scale2d = jnp.pad(scale.reshape(1, C), ((0, 0), (0, C_pad - C)))
        shift2d = jnp.pad(shift.reshape(1, C), ((0, 0), (0, C_pad - C)))

    # Pass 2: fused scale/shift + leaky-relu, streamed over row tiles, writing
    # back into the (donated) padded input buffer.
    y2d = pl.pallas_call(
        functools.partial(_apply_kernel, slope=float(slope)),
        out_shape=jax.ShapeDtypeStruct((M_pad, C_pad), jnp.float32),
        grid=(grid_m,),
        in_specs=[row_spec, vec_spec, vec_spec],
        out_specs=row_spec,
        input_output_aliases={0: 0},
        compiler_params=pltpu.CompilerParams(
            dimension_semantics=("parallel",)),
        cost_estimate=pl.CostEstimate(
            flops=3 * M_pad * C_pad,
            transcendentals=0,
            bytes_accessed=(2 * M_pad * C_pad + 2 * C_pad) * 4),
    )(x2d, scale2d, shift2d)

    y = y2d[:M, :C].reshape(N, H, W, C)
    return jnp.transpose(y, (0, 3, 1, 2)).astype(x_nchw.dtype)


# ---------------------------- pure-JAX reference (for checking) --------------------
def _ref_forward(x, weight, bias, running_mean, running_var,
                 training=True, eps=BN_EPS, slope=LEAKY_SLOPE):
    if training:
        mean = jnp.mean(x, axis=(0, 2, 3))
        var = jnp.mean(jnp.square(x), axis=(0, 2, 3)) - mean ** 2
    else:
        mean, var = running_mean, running_var
    y = (x - mean[None, :, None, None]) / jnp.sqrt(var[None, :, None, None] + eps)
    y = y * weight[None, :, None, None] + bias[None, :, None, None]
    return jnp.where(y >= 0, y, slope * y)


if __name__ == "__main__":
    key = jax.random.PRNGKey(0)
    kx, kw, kb, km, kv = jax.random.split(key, 5)

    N, C, H, W = 2, 4, 16, 16
    x = jax.random.normal(kx, (N, C, H, W), jnp.float32)
    weight = 1.0 + 0.1 * jax.random.normal(kw, (C,), jnp.float32)
    bias = 0.1 * jax.random.normal(kb, (C,), jnp.float32)
    running_mean = 0.1 * jax.random.normal(km, (C,), jnp.float32)
    running_var = jnp.abs(jax.random.normal(kv, (C,), jnp.float32)) + 0.5

    # Training-mode forward (module defaults: training=True, leaky_relu slope 0.01).
    out = inplace_abn_sync_forward(x, weight, bias, running_mean, running_var,
                                   training=True)
    out = jax.block_until_ready(out)
    ref = _ref_forward(x, weight, bias, running_mean, running_var, training=True)
    assert out.shape == x.shape
    assert jnp.allclose(out, ref, atol=1e-4, rtol=1e-4), \
        float(jnp.max(jnp.abs(out - ref)))

    # Eval-mode forward (uses running statistics).
    out_e = inplace_abn_sync_forward(x, weight, bias, running_mean, running_var,
                                     training=False)
    out_e = jax.block_until_ready(out_e)
    ref_e = _ref_forward(x, weight, bias, running_mean, running_var, training=False)
    assert jnp.allclose(out_e, ref_e, atol=1e-4, rtol=1e-4), \
        float(jnp.max(jnp.abs(out_e - ref_e)))

    print("KERNEL_OK")
</pallas_src>

<mosaic_0001>
module attributes {stable_mosaic.version = 11 : i64} {
  func.func @_stats_fold_kernel(%arg0: i32, %arg1: memref<512x128xf32, #tpu.memory_space<vmem>>, %arg2: memref<1x128xf32, #tpu.memory_space<vmem>>, %arg3: memref<1x128xf32, #tpu.memory_space<vmem>>, %arg4: memref<1x128xf32, #tpu.memory_space<vmem>>, %arg5: memref<1x128xf32, #tpu.memory_space<vmem>>, %arg6: memref<1x128xf32, #tpu.memory_space<vmem>>, %arg7: memref<1x128xf32, #tpu.memory_space<vmem>>) attributes {dimension_semantics = [#tpu.dimension_semantics<arbitrary>], iteration_bounds = array<i64: 1>, scalar_prefetch = 0 : i64, scratch_operands = 2 : i64, tpu.core_type = #tpu.core_type<tc>, window_params = [{transform_indices = @transform_0, window_bounds = array<i64: 512, 128>}, {pipeline_mode = #tpu.pipeline_mode<synchronous>, transform_indices = @transform_1, window_bounds = array<i64: 1, 128>}, {pipeline_mode = #tpu.pipeline_mode<synchronous>, transform_indices = @transform_2, window_bounds = array<i64: 1, 128>}, {pipeline_mode = #tpu.pipeline_mode<synchronous>, transform_indices = @transform_3, window_bounds = array<i64: 1, 128>}, {pipeline_mode = #tpu.pipeline_mode<synchronous>, transform_indices = @transform_4, window_bounds = array<i64: 1, 128>}]} {
    %c0_i32 = arith.constant 0 : i32
    %0 = arith.cmpi eq, %arg0, %c0_i32 : i32
    %1 = arith.extui %0 : i1 to i32
    %c0_i32_0 = arith.constant 0 : i32
    %2 = arith.cmpi ne, %1, %c0_i32_0 : i32
    scf.if %2 {
      %cst_13 = arith.constant 0.000000e+00 : f32
      %18 = vector.broadcast %cst_13 : f32 to vector<1x128xf32>
      %c0_14 = arith.constant 0 : index
      %c0_15 = arith.constant 0 : index
      %19 = vector.load %arg6[%c0_14, %c0_15] : memref<1x128xf32, #tpu.memory_space<vmem>>, vector<1x128xf32>
      tpu.vector_store %arg6[%c0_14, %c0_15], %18 {strides = array<i32>} : memref<1x128xf32, #tpu.memory_space<vmem>>, vector<1x128xf32>,
      %cst_16 = arith.constant 0.000000e+00 : f32
      %20 = vector.broadcast %cst_16 : f32 to vector<1x128xf32>
      %c0_17 = arith.constant 0 : index
      %c0_18 = arith.constant 0 : index
      %21 = vector.load %arg7[%c0_17, %c0_18] : memref<1x128xf32, #tpu.memory_space<vmem>>, vector<1x128xf32>
      tpu.vector_store %arg7[%c0_17, %c0_18], %20 {strides = array<i32>} : memref<1x128xf32, #tpu.memory_space<vmem>>, vector<1x128xf32>,
    } else {
    }
    %c0 = arith.constant 0 : index
    %c0_1 = arith.constant 0 : index
    %3 = vector.load %arg1[%c0, %c0_1] : memref<512x128xf32, #tpu.memory_space<vmem>>, vector<512x128xf32>
    %c0_2 = arith.constant 0 : index
    %c0_3 = arith.constant 0 : index
    %4 = vector.load %arg6[%c0_2, %c0_3] : memref<1x128xf32, #tpu.memory_space<vmem>>, vector<1x128xf32>
    %cst = arith.constant dense<0.000000e+00> : vector<128xf32>
    %5 = vector.multi_reduction <add>, %3, %cst [0] : vector<512x128xf32> to vector<128xf32>
    %6 = vector.shape_cast %5 : vector<128xf32> to vector<1x128xf32>
    %7 = arith.addf %4, %6 : vector<1x128xf32>
    %c0_4 = arith.constant 0 : index
    %c0_5 = arith.constant 0 : index
    %8 = vector.load %arg6[%c0_4, %c0_5] : memref<1x128xf32, #tpu.memory_space<vmem>>, vector<1x128xf32>
    tpu.vector_store %arg6[%c0_4, %c0_5], %7 {strides = array<i32>} : memref<1x128xf32, #tpu.memory_space<vmem>>, vector<1x128xf32>,
    %c0_6 = arith.constant 0 : index
    %c0_7 = arith.constant 0 : index
    %9 = vector.load %arg7[%c0_6, %c0_7] : memref<1x128xf32, #tpu.memory_space<vmem>>, vector<1x128xf32>
    %10 = arith.mulf %3, %3 : vector<512x128xf32>
    %cst_8 = arith.constant dense<0.000000e+00> : vector<128xf32>
    %11 = vector.multi_reduction <add>, %10, %cst_8 [0] : vector<512x128xf32> to vector<128xf32>
    %12 = vector.shape_cast %11 : vector<128xf32> to vector<1x128xf32>
    %13 = arith.addf %9, %12 : vector<1x128xf32>
    %c0_9 = arith.constant 0 : index
    %c0_10 = arith.constant 0 : index
    %14 = vector.load %arg7[%c0_9, %c0_10] : memref<1x128xf32, #tpu.memory_space<vmem>>, vector<1x128xf32>
    tpu.vector_store %arg7[%c0_9, %c0_10], %13 {strides = array<i32>} : memref<1x128xf32, #tpu.memory_space<vmem>>, vector<1x128xf32>,
    %c0_i32_11 = arith.constant 0 : i32
    %15 = arith.cmpi eq, %arg0, %c0_i32_11 : i32
    %16 = arith.extui %15 : i1 to i32
    %c0_i32_12 = arith.constant 0 : i32
    %17 = arith.cmpi ne, %16, %c0_i32_12 : i32
    scf.if %17 {
      %c0_13 = arith.constant 0 : index
      %c0_14 = arith.constant 0 : index
      %18 = vector.load %arg6[%c0_13, %c0_14] : memref<1x128xf32, #tpu.memory_space<vmem>>, vector<1x128xf32>
      %cst_15 = arith.constant 0.001953125 : f32
      %19 = vector.broadcast %cst_15 : f32 to vector<1x128xf32>
      %20 = arith.mulf %18, %19 : vector<1x128xf32>
      %c0_16 = arith.constant 0 : index
      %c0_17 = arith.constant 0 : index
      %21 = vector.load %arg7[%c0_16, %c0_17] : memref<1x128xf32, #tpu.memory_space<vmem>>, vector<1x128xf32>
      %cst_18 = arith.constant 0.001953125 : f32
      %22 = vector.broadcast %cst_18 : f32 to vector<1x128xf32>
      %23 = arith.mulf %21, %22 : vector<1x128xf32>
      %24 = arith.mulf %20, %20 : vector<1x128xf32>
      %25 = arith.subf %23, %24 : vector<1x128xf32>
      %c0_19 = arith.constant 0 : index
      %c0_20 = arith.constant 0 : index
      %26 = vector.load %arg2[%c0_19, %c0_20] : memref<1x128xf32, #tpu.memory_space<vmem>>, vector<1x128xf32>
      %cst_21 = arith.constant 9.99999974E-6 : f32
      %27 = vector.broadcast %cst_21 : f32 to vector<1x128xf32>
      %28 = arith.addf %25, %27 : vector<1x128xf32>
      %29 = math.rsqrt %28 : vector<1x128xf32>
      %30 = arith.mulf %26, %29 : vector<1x128xf32>
      %c0_22 = arith.constant 0 : index
      %c0_23 = arith.constant 0 : index
      %31 = vector.load %arg4[%c0_22, %c0_23] : memref<1x128xf32, #tpu.memory_space<vmem>>, vector<1x128xf32>
      tpu.vector_store %arg4[%c0_22, %c0_23], %30 {strides = array<i32>} : memref<1x128xf32, #tpu.memory_space<vmem>>, vector<1x128xf32>,
      %c0_24 = arith.constant 0 : index
      %c0_25 = arith.constant 0 : index
      %32 = vector.load %arg3[%c0_24, %c0_25] : memref<1x128xf32, #tpu.memory_space<vmem>>, vector<1x128xf32>
      %33 = arith.mulf %20, %30 : vector<1x128xf32>
      %34 = arith.subf %32, %33 : vector<1x128xf32>
      %c0_26 = arith.constant 0 : index
      %c0_27 = arith.constant 0 : index
      %35 = vector.load %arg5[%c0_26, %c0_27] : memref<1x128xf32, #tpu.memory_space<vmem>>, vector<1x128xf32>
      tpu.vector_store %arg5[%c0_26, %c0_27], %34 {strides = array<i32>} : memref<1x128xf32, #tpu.memory_space<vmem>>, vector<1x128xf32>,
    } else {
    }
    return
  }
  func.func @transform_0(%arg0: i32) -> (i32, i32) {
    %c0_i32 = arith.constant 0 : i32
    %c0_i32_0 = arith.constant 0 : i32
    return %arg0, %c0_i32 : i32, i32
  }
  func.func @transform_1(%arg0: i32) -> (i32, i32) {
    %c0_i32 = arith.constant 0 : i32
    %c0_i32_0 = arith.constant 0 : i32
    %c0_i32_1 = arith.constant 0 : i32
    return %c0_i32, %c0_i32_0 : i32, i32
  }
  func.func @transform_2(%arg0: i32) -> (i32, i32) {
    %c0_i32 = arith.constant 0 : i32
    %c0_i32_0 = arith.constant 0 : i32
    %c0_i32_1 = arith.constant 0 : i32
    return %c0_i32, %c0_i32_0 : i32, i32
  }
  func.func @transform_3(%arg0: i32) -> (i32, i32) {
    %c0_i32 = arith.constant 0 : i32
    %c0_i32_0 = arith.constant 0 : i32
    %c0_i32_1 = arith.constant 0 : i32
    return %c0_i32, %c0_i32_0 : i32, i32
  }
  func.func @transform_4(%arg0: i32) -> (i32, i32) {
    %c0_i32 = arith.constant 0 : i32
    %c0_i32_0 = arith.constant 0 : i32
    %c0_i32_1 = arith.constant 0 : i32
    return %c0_i32, %c0_i32_0 : i32, i32
  }
}

module attributes {stable_mosaic.version = 11 : i64} {
  func.func @_apply_kernel(%arg0: i32, %arg1: memref<512x128xf32, #tpu.memory_space<vmem>>, %arg2: memref<1x128xf32, #tpu.memory_space<vmem>>, %arg3: memref<1x128xf32, #tpu.memory_space<vmem>>, %arg4: memref<512x128xf32, #tpu.memory_space<vmem>>) attributes {dimension_semantics = [#tpu.dimension_semantics<parallel>], iteration_bounds = array<i64: 1>, scalar_prefetch = 0 : i64, scratch_operands = 0 : i64, tpu.core_type = #tpu.core_type<tc>, window_params = [{transform_indices = @transform_0, window_bounds = array<i64: 512, 128>}, {pipeline_mode = #tpu.pipeline_mode<synchronous>, transform_indices = @transform_1, window_bounds = array<i64: 1, 128>}, {pipeline_mode = #tpu.pipeline_mode<synchronous>, transform_indices = @transform_2, window_bounds = array<i64: 1, 128>}, {transform_indices = @transform_3, window_bounds = array<i64: 512, 128>}]} {
    %c0 = arith.constant 0 : index
    %c0_0 = arith.constant 0 : index
    %0 = vector.load %arg1[%c0, %c0_0] : memref<512x128xf32, #tpu.memory_space<vmem>>, vector<512x128xf32>
    %c0_1 = arith.constant 0 : index
    %c0_2 = arith.constant 0 : index
    %1 = vector.load %arg2[%c0_1, %c0_2] : memref<1x128xf32, #tpu.memory_space<vmem>>, vector<1x128xf32>
    %2 = vector.broadcast %1 : vector<1x128xf32> to vector<512x128xf32>
    %3 = arith.mulf %0, %2 : vector<512x128xf32>
    %c0_3 = arith.constant 0 : index
    %c0_4 = arith.constant 0 : index
    %4 = vector.load %arg3[%c0_3, %c0_4] : memref<1x128xf32, #tpu.memory_space<vmem>>, vector<1x128xf32>
    %5 = vector.broadcast %4 : vector<1x128xf32> to vector<512x128xf32>
    %6 = arith.addf %3, %5 : vector<512x128xf32>
    %cst = arith.constant 0.000000e+00 : f32
    %7 = vector.broadcast %cst : f32 to vector<512x128xf32>
    %8 = arith.cmpf oge, %6, %7 : vector<512x128xf32>
    %cst_5 = arith.constant 0.00999999977 : f32
    %9 = vector.broadcast %cst_5 : f32 to vector<512x128xf32>
    %10 = arith.mulf %9, %6 : vector<512x128xf32>
    %11 = arith.select %8, %6, %10 : vector<512x128xi1>, vector<512x128xf32>
    %c0_6 = arith.constant 0 : index
    %c0_7 = arith.constant 0 : index
    %12 = vector.load %arg4[%c0_6, %c0_7] : memref<512x128xf32, #tpu.memory_space<vmem>>, vector<512x128xf32>
    tpu.vector_store %arg4[%c0_6, %c0_7], %11 {strides = array<i32>} : memref<512x128xf32, #tpu.memory_space<vmem>>, vector<512x128xf32>,
    return
  }
  func.func @transform_0(%arg0: i32) -> (i32, i32) {
    %c0_i32 = arith.constant 0 : i32
    %c0_i32_0 = arith.constant 0 : i32
    return %arg0, %c0_i32 : i32, i32
  }
  func.func @transform_1(%arg0: i32) -> (i32, i32) {
    %c0_i32 = arith.constant 0 : i32
    %c0_i32_0 = arith.constant 0 : i32
    %c0_i32_1 = arith.constant 0 : i32
    return %c0_i32, %c0_i32_0 : i32, i32
  }
  func.func @transform_2(%arg0: i32) -> (i32, i32) {
    %c0_i32 = arith.constant 0 : i32
    %c0_i32_0 = arith.constant 0 : i32
    %c0_i32_1 = arith.constant 0 : i32
    return %c0_i32, %c0_i32_0 : i32, i32
  }
  func.func @transform_3(%arg0: i32) -> (i32, i32) {
    %c0_i32 = arith.constant 0 : i32
    %c0_i32_0 = arith.constant 0 : i32
    return %arg0, %c0_i32 : i32, i32
  }
}

</mosaic_0001>

<llo_original>
// kernel: inplace_abn_sync_forward.3
$region0: #{inplace_abn_sync_forward.3}
  #allocation0 [shape = 'u32[]', space=smem, size = 0x4, offset = 0x4, fixed_abs, tag = 'smem constant byte address 0x4 - core index']
  #allocation1 [shape = 'u32[144,128]{1,0:T(1,128)}', space=vmem, size = 0x12000, scoped, tag = 'internal scratch']
  %s0 = inlined_call_operand.vmem [shape: f32[512,128], index: 0, kind: input, shape index: {}, may-alias: {0,3}]
  %s1 = inlined_call_operand.vmem [shape: f32[1,128], index: 1, kind: input, shape index: {}]
  %s2 = inlined_call_operand.vmem [shape: f32[1,128], index: 2, kind: input, shape index: {}]
  %s3 = inlined_call_operand.vmem [shape: f32[512,128], index: 3, kind: output, shape index: {}, may-alias: {0,3}]
  %s4 = sld [smem:[#allocation0]]
  $region22: #{inplace_abn_sync_forward.3} parent=0
    _
  %s6 = ssub.s32 1, %s4
  %s7 = scalar_select 0, %s6, %s4
  // Predicated region
  $region2: #{inplace_abn_sync_forward.3} parent=0 // pred_check
    _
  $region3: #{inplace_abn_sync_forward.3} parent=0 // pred_check_branch
    %9 = sbr.rel (0) target = $region5
  $region4: #{inplace_abn_sync_forward.3} parent=0 // pred_region
    _
  $region5: #{inplace_abn_sync_forward.3} parent=0 // pred_fallthru
    _
  // Predicated region
  $region6: #{inplace_abn_sync_forward.3} parent=0 // pred_check
    _
  $region7: #{inplace_abn_sync_forward.3} parent=0 // pred_check_branch
    %11 = sbr.rel (0) target = $region9
  $region8: #{inplace_abn_sync_forward.3} parent=0 // pred_region
    _
  $region9: #{inplace_abn_sync_forward.3} parent=0 // pred_fallthru
    _
  // Predicated region
  $region10: #{inplace_abn_sync_forward.3} parent=0 // pred_check
    _
  $region11: #{inplace_abn_sync_forward.3} parent=0 // pred_check_branch
    %13 = sbr.rel (0) target = $region13
  $region12: #{inplace_abn_sync_forward.3} parent=0 // pred_region
    _
  $region13: #{inplace_abn_sync_forward.3} parent=0 // pred_fallthru
    _
  %v14 = vld [vmem:[%s0] sm:$0xff]
  %v15 = vld [vmem:[%s0 + $0x8] sm:$0xff]
  %v16 = vld [vmem:[%s0 + $0x10] sm:$0xff]
  %v17 = vld [vmem:[%s0 + $0x18] sm:$0xff]
  %v18 = vld [vmem:[%s0 + $0x20] sm:$0xff]
  %v19 = vld [vmem:[%s0 + $0x28] sm:$0xff]
  %v20 = vld [vmem:[%s0 + $0x30] sm:$0xff]
  %v21 = vld [vmem:[%s0 + $0x38] sm:$0xff]
  %v22 = vld [vmem:[%s0 + $0x40] sm:$0xff]
  %v23 = vld [vmem:[%s0 + $0x48] sm:$0xff]
  %v24 = vld [vmem:[%s0 + $0x50] sm:$0xff]
  %v25 = vld [vmem:[%s0 + $0x58] sm:$0xff]
  %v26 = vld [vmem:[%s0 + $0x60] sm:$0xff]
  %v27 = vld [vmem:[%s0 + $0x68] sm:$0xff]
  %v28 = vld [vmem:[%s0 + $0x70] sm:$0xff]
  %v29 = vld [vmem:[%s0 + $0x78] sm:$0xff]
  %v30 = vld [vmem:[%s0 + $0x80] sm:$0xff]
  %v31 = vld [vmem:[%s0 + $0x88] sm:$0xff]
  %v32 = vld [vmem:[%s0 + $0x90] sm:$0xff]
  %v33 = vld [vmem:[%s0 + $0x98] sm:$0xff]
  %v34 = vld [vmem:[%s0 + $0xa0] sm:$0xff]
  %v35 = vld [vmem:[%s0 + $0xa8] sm:$0xff]
  %v36 = vld [vmem:[%s0 + $0xb0] sm:$0xff]
  %v37 = vld [vmem:[%s0 + $0xb8] sm:$0xff]
  %v38 = vld [vmem:[%s0 + $0xc0] sm:$0xff]
  %v39 = vld [vmem:[%s0 + $0xc8] sm:$0xff]
  %v40 = vld [vmem:[%s0 + $0xd0] sm:$0xff]
  %v41 = vld [vmem:[%s0 + $0xd8] sm:$0xff]
  %v42 = vld [vmem:[%s0 + $0xe0] sm:$0xff]
  %v43 = vld [vmem:[%s0 + $0xe8] sm:$0xff]
  %v44 = vld [vmem:[%s0 + $0xf0] sm:$0xff]
  %v45 = vld [vmem:[%s0 + $0xf8] sm:$0xff]
  %v46 = vld [vmem:[%s0 + $0x100] sm:$0xff]
  %v47 = vld [vmem:[%s0 + $0x108] sm:$0xff]
  %v48 = vld [vmem:[%s0 + $0x110] sm:$0xff]
  %v49 = vld [vmem:[%s0 + $0x118] sm:$0xff]
  %v50 = vld [vmem:[%s0 + $0x120] sm:$0xff]
  %v51 = vld [vmem:[%s0 + $0x128] sm:$0xff]
  %v52 = vld [vmem:[%s0 + $0x130] sm:$0xff]
  %v53 = vld [vmem:[%s0 + $0x138] sm:$0xff]
  %v54 = vld [vmem:[%s0 + $0x140] sm:$0xff]
  %v55 = vld [vmem:[%s0 + $0x148] sm:$0xff]
  %v56 = vld [vmem:[%s0 + $0x150] sm:$0xff]
  %v57 = vld [vmem:[%s0 + $0x158] sm:$0xff]
  %v58 = vld [vmem:[%s0 + $0x160] sm:$0xff]
  %v59 = vld [vmem:[%s0 + $0x168] sm:$0xff]
  %v60 = vld [vmem:[%s0 + $0x170] sm:$0xff]
  %v61 = vld [vmem:[%s0 + $0x178] sm:$0xff]
  %v62 = vld [vmem:[%s0 + $0x180] sm:$0xff]
  %v63 = vld [vmem:[%s0 + $0x188] sm:$0xff]
  %v64 = vld [vmem:[%s0 + $0x190] sm:$0xff]
  %v65 = vld [vmem:[%s0 + $0x198] sm:$0xff]
  %v66 = vld [vmem:[%s0 + $0x1a0] sm:$0xff]
  %v67 = vld [vmem:[%s0 + $0x1a8] sm:$0xff]
  %v68 = vld [vmem:[%s0 + $0x1b0] sm:$0xff]
  %v69 = vld [vmem:[%s0 + $0x1b8] sm:$0xff]
  %v70 = vld [vmem:[%s0 + $0x1c0] sm:$0xff]
  %v71 = vld [vmem:[%s0 + $0x1c8] sm:$0xff]
  %v72 = vld [vmem:[%s0 + $0x1d0] sm:$0xff]
  %v73 = vld [vmem:[%s0 + $0x1d8] sm:$0xff]
  %v74 = vld [vmem:[%s0 + $0x1e0] sm:$0xff]
  %v75 = vld [vmem:[%s0 + $0x1e8] sm:$0xff]
  %v76 = vld [vmem:[%s0 + $0x1f0] sm:$0xff]
  %v77 = vld [vmem:[%s0 + $0x1f8] sm:$0xff]
  %v78 = vld [vmem:[%s1] sm:$0x1]
  %v80 = vlaneseq
  %v81 = vshrl.u32 %v80, 7
  %v82 = vsub.s32 0, %v81
  %v83 = vrot.slane %v78, %v82
  %v85 = vmul.f32 %v14, %v83
  %v86 = vmul.f32 %v15, %v83
  %v87 = vmul.f32 %v16, %v83
  %v88 = vmul.f32 %v17, %v83
  %v89 = vmul.f32 %v18, %v83
  %v90 = vmul.f32 %v19, %v83
  %v91 = vmul.f32 %v20, %v83
  %v92 = vmul.f32 %v21, %v83
  %v93 = vmul.f32 %v22, %v83
  %v94 = vmul.f32 %v23, %v83
  %v95 = vmul.f32 %v24, %v83
  %v96 = vmul.f32 %v25, %v83
  %v97 = vmul.f32 %v26, %v83
  %v98 = vmul.f32 %v27, %v83
  %v99 = vmul.f32 %v28, %v83
  %v100 = vmul.f32 %v29, %v83
  %v101 = vmul.f32 %v30, %v83
  %v102 = vmul.f32 %v31, %v83
  %v103 = vmul.f32 %v32, %v83
  %v104 = vmul.f32 %v33, %v83
  %v105 = vmul.f32 %v34, %v83
  %v106 = vmul.f32 %v35, %v83
  %v107 = vmul.f32 %v36, %v83
  %v108 = vmul.f32 %v37, %v83
  %v109 = vmul.f32 %v38, %v83
  %v110 = vmul.f32 %v39, %v83
  %v111 = vmul.f32 %v40, %v83
  %v112 = vmul.f32 %v41, %v83
  %v113 = vmul.f32 %v42, %v83
  %v114 = vmul.f32 %v43, %v83
  %v115 = vmul.f32 %v44, %v83
  %v116 = vmul.f32 %v45, %v83
  %v117 = vmul.f32 %v46, %v83
  %v118 = vmul.f32 %v47, %v83
  %v119 = vmul.f32 %v48, %v83
  %v120 = vmul.f32 %v49, %v83
  %v121 = vmul.f32 %v50, %v83
  %v122 = vmul.f32 %v51, %v83
  %v123 = vmul.f32 %v52, %v83
  %v124 = vmul.f32 %v53, %v83
  %v125 = vmul.f32 %v54, %v83
  %v126 = vmul.f32 %v55, %v83
  %v127 = vmul.f32 %v56, %v83
  %v128 = vmul.f32 %v57, %v83
  %v129 = vmul.f32 %v58, %v83
  %v130 = vmul.f32 %v59, %v83
  %v131 = vmul.f32 %v60, %v83
  %v132 = vmul.f32 %v61, %v83
  %v133 = vmul.f32 %v62, %v83
  %v134 = vmul.f32 %v63, %v83
  %v135 = vmul.f32 %v64, %v83
  %v136 = vmul.f32 %v65, %v83
  %v137 = vmul.f32 %v66, %v83
  %v138 = vmul.f32 %v67, %v83
  %v139 = vmul.f32 %v68, %v83
  %v140 = vmul.f32 %v69, %v83
  %v141 = vmul.f32 %v70, %v83
  %v142 = vmul.f32 %v71, %v83
  %v143 = vmul.f32 %v72, %v83
  %v144 = vmul.f32 %v73, %v83
  %v145 = vmul.f32 %v74, %v83
  %v146 = vmul.f32 %v75, %v83
  %v147 = vmul.f32 %v76, %v83
  %v148 = vmul.f32 %v77, %v83
  %v149 = vld [vmem:[%s2] sm:$0x1]
  %v151 = vlaneseq
  %v152 = vshrl.u32 %v151, 7
  %v153 = vsub.s32 0, %v152
  %v154 = vrot.slane %v149, %v153
  %v156 = vadd.f32 %v85, %v154
  %v157 = vadd.f32 %v86, %v154
  %v158 = vadd.f32 %v87, %v154
  %v159 = vadd.f32 %v88, %v154
  %v160 = vadd.f32 %v89, %v154
  %v161 = vadd.f32 %v90, %v154
  %v162 = vadd.f32 %v91, %v154
  %v163 = vadd.f32 %v92, %v154
  %v164 = vadd.f32 %v93, %v154
  %v165 = vadd.f32 %v94, %v154
  %v166 = vadd.f32 %v95, %v154
  %v167 = vadd.f32 %v96, %v154
  %v168 = vadd.f32 %v97, %v154
  %v169 = vadd.f32 %v98, %v154
  %v170 = vadd.f32 %v99, %v154
  %v171 = vadd.f32 %v100, %v154
  %v172 = vadd.f32 %v101, %v154
  %v173 = vadd.f32 %v102, %v154
  %v174 = vadd.f32 %v103, %v154
  %v175 = vadd.f32 %v104, %v154
  %v176 = vadd.f32 %v105, %v154
  %v177 = vadd.f32 %v106, %v154
  %v178 = vadd.f32 %v107, %v154
  %v179 = vadd.f32 %v108, %v154
  %v180 = vadd.f32 %v109, %v154
  %v181 = vadd.f32 %v110, %v154
  %v182 = vadd.f32 %v111, %v154
  %v183 = vadd.f32 %v112, %v154
  %v184 = vadd.f32 %v113, %v154
  %v185 = vadd.f32 %v114, %v154
  %v186 = vadd.f32 %v115, %v154
  %v187 = vadd.f32 %v116, %v154
  %v188 = vadd.f32 %v117, %v154
  %v189 = vadd.f32 %v118, %v154
  %v190 = vadd.f32 %v119, %v154
  %v191 = vadd.f32 %v120, %v154
  %v192 = vadd.f32 %v121, %v154
  %v193 = vadd.f32 %v122, %v154
  %v194 = vadd.f32 %v123, %v154
  %v195 = vadd.f32 %v124, %v154
  %v196 = vadd.f32 %v125, %v154
  %v197 = vadd.f32 %v126, %v154
  %v198 = vadd.f32 %v127, %v154
  %v199 = vadd.f32 %v128, %v154
  %v200 = vadd.f32 %v129, %v154
  %v201 = vadd.f32 %v130, %v154
  %v202 = vadd.f32 %v131, %v154
  %v203 = vadd.f32 %v132, %v154
  %v204 = vadd.f32 %v133, %v154
  %v205 = vadd.f32 %v134, %v154
  %v206 = vadd.f32 %v135, %v154
  %v207 = vadd.f32 %v136, %v154
  %v208 = vadd.f32 %v137, %v154
  %v209 = vadd.f32 %v138, %v154
  %v210 = vadd.f32 %v139, %v154
  %v211 = vadd.f32 %v140, %v154
  %v212 = vadd.f32 %v141, %v154
  %v213 = vadd.f32 %v142, %v154
  %v214 = vadd.f32 %v143, %v154
  %v215 = vadd.f32 %v144, %v154
  %v216 = vadd.f32 %v145, %v154
  %v217 = vadd.f32 %v146, %v154
  %v218 = vadd.f32 %v147, %v154
  %v219 = vadd.f32 %v148, %v154
  %vm220 = vcmp.ge.f32.partialorder %v156, 0.0
  %vm221 = vcmp.ge.f32.partialorder %v157, 0.0
  %vm222 = vcmp.ge.f32.partialorder %v158, 0.0
  %vm223 = vcmp.ge.f32.partialorder %v159, 0.0
  %vm224 = vcmp.ge.f32.partialorder %v160, 0.0
  %vm225 = vcmp.ge.f32.partialorder %v161, 0.0
  %vm226 = vcmp.ge.f32.partialorder %v162, 0.0
  %vm227 = vcmp.ge.f32.partialorder %v163, 0.0
  %vm228 = vcmp.ge.f32.partialorder %v164, 0.0
  %vm229 = vcmp.ge.f32.partialorder %v165, 0.0
  %vm230 = vcmp.ge.f32.partialorder %v166, 0.0
  %vm231 = vcmp.ge.f32.partialorder %v167, 0.0
  %vm232 = vcmp.ge.f32.partialorder %v168, 0.0
  %vm233 = vcmp.ge.f32.partialorder %v169, 0.0
  %vm234 = vcmp.ge.f32.partialorder %v170, 0.0
  %vm235 = vcmp.ge.f32.partialorder %v171, 0.0
  %vm236 = vcmp.ge.f32.partialorder %v172, 0.0
  %vm237 = vcmp.ge.f32.partialorder %v173, 0.0
  %vm238 = vcmp.ge.f32.partialorder %v174, 0.0
  %vm239 = vcmp.ge.f32.partialorder %v175, 0.0
  %vm240 = vcmp.ge.f32.partialorder %v176, 0.0
  %vm241 = vcmp.ge.f32.partialorder %v177, 0.0
  %vm242 = vcmp.ge.f32.partialorder %v178, 0.0
  %vm243 = vcmp.ge.f32.partialorder %v179, 0.0
  %vm244 = vcmp.ge.f32.partialorder %v180, 0.0
  %vm245 = vcmp.ge.f32.partialorder %v181, 0.0
  %vm246 = vcmp.ge.f32.partialorder %v182, 0.0
  %vm247 = vcmp.ge.f32.partialorder %v183, 0.0
  %vm248 = vcmp.ge.f32.partialorder %v184, 0.0
  %vm249 = vcmp.ge.f32.partialorder %v185, 0.0
  %vm250 = vcmp.ge.f32.partialorder %v186, 0.0
  %vm251 = vcmp.ge.f32.partialorder %v187, 0.0
  %vm252 = vcmp.ge.f32.partialorder %v188, 0.0
  %vm253 = vcmp.ge.f32.partialorder %v189, 0.0
  %vm254 = vcmp.ge.f32.partialorder %v190, 0.0
  %vm255 = vcmp.ge.f32.partialorder %v191, 0.0
  %vm256 = vcmp.ge.f32.partialorder %v192, 0.0
  %vm257 = vcmp.ge.f32.partialorder %v193, 0.0
  %vm258 = vcmp.ge.f32.partialorder %v194, 0.0
  %vm259 = vcmp.ge.f32.partialorder %v195, 0.0
  %vm260 = vcmp.ge.f32.partialorder %v196, 0.0
  %vm261 = vcmp.ge.f32.partialorder %v197, 0.0
  %vm262 = vcmp.ge.f32.partialorder %v198, 0.0
  %vm263 = vcmp.ge.f32.partialorder %v199, 0.0
  %vm264 = vcmp.ge.f32.partialorder %v200, 0.0
  %vm265 = vcmp.ge.f32.partialorder %v201, 0.0
  %vm266 = vcmp.ge.f32.partialorder %v202, 0.0
  %vm267 = vcmp.ge.f32.partialorder %v203, 0.0
  %vm268 = vcmp.ge.f32.partialorder %v204, 0.0
  %vm269 = vcmp.ge.f32.partialorder %v205, 0.0
  %vm270 = vcmp.ge.f32.partialorder %v206, 0.0
  %vm271 = vcmp.ge.f32.partialorder %v207, 0.0
  %vm272 = vcmp.ge.f32.partialorder %v208, 0.0
  %vm273 = vcmp.ge.f32.partialorder %v209, 0.0
  %vm274 = vcmp.ge.f32.partialorder %v210, 0.0
  %vm275 = vcmp.ge.f32.partialorder %v211, 0.0
  %vm276 = vcmp.ge.f32.partialorder %v212, 0.0
  %vm277 = vcmp.ge.f32.partialorder %v213, 0.0
  %vm278 = vcmp.ge.f32.partialorder %v214, 0.0
  %vm279 = vcmp.ge.f32.partialorder %v215, 0.0
  %vm280 = vcmp.ge.f32.partialorder %v216, 0.0
  %vm281 = vcmp.ge.f32.partialorder %v217, 0.0
  %vm282 = vcmp.ge.f32.partialorder %v218, 0.0
  %vm283 = vcmp.ge.f32.partialorder %v219, 0.0
  %v284 = vmul.f32 %v156, 0.01
  %v285 = vmul.f32 %v157, 0.01
  %v286 = vmul.f32 %v158, 0.01
  %v287 = vmul.f32 %v159, 0.01
  %v288 = vmul.f32 %v160, 0.01
  %v289 = vmul.f32 %v161, 0.01
  %v290 = vmul.f32 %v162, 0.01
  %v291 = vmul.f32 %v163, 0.01
  %v292 = vmul.f32 %v164, 0.01
  %v293 = vmul.f32 %v165, 0.01
  %v294 = vmul.f32 %v166, 0.01
  %v295 = vmul.f32 %v167, 0.01
  %v296 = vmul.f32 %v168, 0.01
  %v297 = vmul.f32 %v169, 0.01
  %v298 = vmul.f32 %v170, 0.01
  %v299 = vmul.f32 %v171, 0.01
  %v300 = vmul.f32 %v172, 0.01
  %v301 = vmul.f32 %v173, 0.01
  %v302 = vmul.f32 %v174, 0.01
  %v303 = vmul.f32 %v175, 0.01
  %v304 = vmul.f32 %v176, 0.01
  %v305 = vmul.f32 %v177, 0.01
  %v306 = vmul.f32 %v178, 0.01
  %v307 = vmul.f32 %v179, 0.01
  %v308 = vmul.f32 %v180, 0.01
  %v309 = vmul.f32 %v181, 0.01
  %v310 = vmul.f32 %v182, 0.01
  %v311 = vmul.f32 %v183, 0.01
  %v312 = vmul.f32 %v184, 0.01
  %v313 = vmul.f32 %v185, 0.01
  %v314 = vmul.f32 %v186, 0.01
  %v315 = vmul.f32 %v187, 0.01
  %v316 = vmul.f32 %v188, 0.01
  %v317 = vmul.f32 %v189, 0.01
  %v318 = vmul.f32 %v190, 0.01
  %v319 = vmul.f32 %v191, 0.01
  %v320 = vmul.f32 %v192, 0.01
  %v321 = vmul.f32 %v193, 0.01
  %v322 = vmul.f32 %v194, 0.01
  %v323 = vmul.f32 %v195, 0.01
  %v324 = vmul.f32 %v196, 0.01
  %v325 = vmul.f32 %v197, 0.01
  %v326 = vmul.f32 %v198, 0.01
  %v327 = vmul.f32 %v199, 0.01
  %v328 = vmul.f32 %v200, 0.01
  %v329 = vmul.f32 %v201, 0.01
  %v330 = vmul.f32 %v202, 0.01
  %v331 = vmul.f32 %v203, 0.01
  %v332 = vmul.f32 %v204, 0.01
  %v333 = vmul.f32 %v205, 0.01
  %v334 = vmul.f32 %v206, 0.01
  %v335 = vmul.f32 %v207, 0.01
  %v336 = vmul.f32 %v208, 0.01
  %v337 = vmul.f32 %v209, 0.01
  %v338 = vmul.f32 %v210, 0.01
  %v339 = vmul.f32 %v211, 0.01
  %v340 = vmul.f32 %v212, 0.01
  %v341 = vmul.f32 %v213, 0.01
  %v342 = vmul.f32 %v214, 0.01
  %v343 = vmul.f32 %v215, 0.01
  %v344 = vmul.f32 %v216, 0.01
  %v345 = vmul.f32 %v217, 0.01
  %v346 = vmul.f32 %v218, 0.01
  %v347 = vmul.f32 %v219, 0.01
  %v348 = vsel %vm220, %v156, %v284
  %v349 = vsel %vm221, %v157, %v285
  %v350 = vsel %vm222, %v158, %v286
  %v351 = vsel %vm223, %v159, %v287
  %v352 = vsel %vm224, %v160, %v288
  %v353 = vsel %vm225, %v161, %v289
  %v354 = vsel %vm226, %v162, %v290
  %v355 = vsel %vm227, %v163, %v291
  %v356 = vsel %vm228, %v164, %v292
  %v357 = vsel %vm229, %v165, %v293
  %v358 = vsel %vm230, %v166, %v294
  %v359 = vsel %vm231, %v167, %v295
  %v360 = vsel %vm232, %v168, %v296
  %v361 = vsel %vm233, %v169, %v297
  %v362 = vsel %vm234, %v170, %v298
  %v363 = vsel %vm235, %v171, %v299
  %v364 = vsel %vm236, %v172, %v300
  %v365 = vsel %vm237, %v173, %v301
  %v366 = vsel %vm238, %v174, %v302
  %v367 = vsel %vm239, %v175, %v303
  %v368 = vsel %vm240, %v176, %v304
  %v369 = vsel %vm241, %v177, %v305
  %v370 = vsel %vm242, %v178, %v306
  %v371 = vsel %vm243, %v179, %v307
  %v372 = vsel %vm244, %v180, %v308
  %v373 = vsel %vm245, %v181, %v309
  %v374 = vsel %vm246, %v182, %v310
  %v375 = vsel %vm247, %v183, %v311
  %v376 = vsel %vm248, %v184, %v312
  %v377 = vsel %vm249, %v185, %v313
  %v378 = vsel %vm250, %v186, %v314
  %v379 = vsel %vm251, %v187, %v315
  %v380 = vsel %vm252, %v188, %v316
  %v381 = vsel %vm253, %v189, %v317
  %v382 = vsel %vm254, %v190, %v318
  %v383 = vsel %vm255, %v191, %v319
  %v384 = vsel %vm256, %v192, %v320
  %v385 = vsel %vm257, %v193, %v321
  %v386 = vsel %vm258, %v194, %v322
  %v387 = vsel %vm259, %v195, %v323
  %v388 = vsel %vm260, %v196, %v324
  %v389 = vsel %vm261, %v197, %v325
  %v390 = vsel %vm262, %v198, %v326
  %v391 = vsel %vm263, %v199, %v327
  %v392 = vsel %vm264, %v200, %v328
  %v393 = vsel %vm265, %v201, %v329
  %v394 = vsel %vm266, %v202, %v330
  %v395 = vsel %vm267, %v203, %v331
  %v396 = vsel %vm268, %v204, %v332
  %v397 = vsel %vm269, %v205, %v333
  %v398 = vsel %vm270, %v206, %v334
  %v399 = vsel %vm271, %v207, %v335
  %v400 = vsel %vm272, %v208, %v336
  %v401 = vsel %vm273, %v209, %v337
  %v402 = vsel %vm274, %v210, %v338
  %v403 = vsel %vm275, %v211, %v339
  %v404 = vsel %vm276, %v212, %v340
  %v405 = vsel %vm277, %v213, %v341
  %v406 = vsel %vm278, %v214, %v342
  %v407 = vsel %vm279, %v215, %v343
  %v408 = vsel %vm280, %v216, %v344
  %v409 = vsel %vm281, %v217, %v345
  %v410 = vsel %vm282, %v218, %v346
  %v411 = vsel %vm283, %v219, %v347
  %412 = vst [vmem:[%s3] sm:$0xff] %v348
  %413 = vst [vmem:[%s3 + $0x8] sm:$0xff] %v349
  %414 = vst [vmem:[%s3 + $0x10] sm:$0xff] %v350
  %415 = vst [vmem:[%s3 + $0x18] sm:$0xff] %v351
  %416 = vst [vmem:[%s3 + $0x20] sm:$0xff] %v352
  %417 = vst [vmem:[%s3 + $0x28] sm:$0xff] %v353
  %418 = vst [vmem:[%s3 + $0x30] sm:$0xff] %v354
  %419 = vst [vmem:[%s3 + $0x38] sm:$0xff] %v355
  %420 = vst [vmem:[%s3 + $0x40] sm:$0xff] %v356
  %421 = vst [vmem:[%s3 + $0x48] sm:$0xff] %v357
  %422 = vst [vmem:[%s3 + $0x50] sm:$0xff] %v358
  %423 = vst [vmem:[%s3 + $0x58] sm:$0xff] %v359
  %424 = vst [vmem:[%s3 + $0x60] sm:$0xff] %v360
  %425 = vst [vmem:[%s3 + $0x68] sm:$0xff] %v361
  %426 = vst [vmem:[%s3 + $0x70] sm:$0xff] %v362
  %427 = vst [vmem:[%s3 + $0x78] sm:$0xff] %v363
  %428 = vst [vmem:[%s3 + $0x80] sm:$0xff] %v364
  %429 = vst [vmem:[%s3 + $0x88] sm:$0xff] %v365
  %430 = vst [vmem:[%s3 + $0x90] sm:$0xff] %v366
  %431 = vst [vmem:[%s3 + $0x98] sm:$0xff] %v367
  %432 = vst [vmem:[%s3 + $0xa0] sm:$0xff] %v368
  %433 = vst [vmem:[%s3 + $0xa8] sm:$0xff] %v369
  %434 = vst [vmem:[%s3 + $0xb0] sm:$0xff] %v370
  %435 = vst [vmem:[%s3 + $0xb8] sm:$0xff] %v371
  %436 = vst [vmem:[%s3 + $0xc0] sm:$0xff] %v372
  %437 = vst [vmem:[%s3 + $0xc8] sm:$0xff] %v373
  %438 = vst [vmem:[%s3 + $0xd0] sm:$0xff] %v374
  %439 = vst [vmem:[%s3 + $0xd8] sm:$0xff] %v375
  %440 = vst [vmem:[%s3 + $0xe0] sm:$0xff] %v376
  %441 = vst [vmem:[%s3 + $0xe8] sm:$0xff] %v377
  %442 = vst [vmem:[%s3 + $0xf0] sm:$0xff] %v378
  %443 = vst [vmem:[%s3 + $0xf8] sm:$0xff] %v379
  %444 = vst [vmem:[%s3 + $0x100] sm:$0xff] %v380
  %445 = vst [vmem:[%s3 + $0x108] sm:$0xff] %v381
  %446 = vst [vmem:[%s3 + $0x110] sm:$0xff] %v382
  %447 = vst [vmem:[%s3 + $0x118] sm:$0xff] %v383
  %448 = vst [vmem:[%s3 + $0x120] sm:$0xff] %v384
  %449 = vst [vmem:[%s3 + $0x128] sm:$0xff] %v385
  %450 = vst [vmem:[%s3 + $0x130] sm:$0xff] %v386
  %451 = vst [vmem:[%s3 + $0x138] sm:$0xff] %v387
  %452 = vst [vmem:[%s3 + $0x140] sm:$0xff] %v388
  %453 = vst [vmem:[%s3 + $0x148] sm:$0xff] %v389
  %454 = vst [vmem:[%s3 + $0x150] sm:$0xff] %v390
  %455 = vst [vmem:[%s3 + $0x158] sm:$0xff] %v391
  %456 = vst [vmem:[%s3 + $0x160] sm:$0xff] %v392
  %457 = vst [vmem:[%s3 + $0x168] sm:$0xff] %v393
  %458 = vst [vmem:[%s3 + $0x170] sm:$0xff] %v394
  %459 = vst [vmem:[%s3 + $0x178] sm:$0xff] %v395
  %460 = vst [vmem:[%s3 + $0x180] sm:$0xff] %v396
  %461 = vst [vmem:[%s3 + $0x188] sm:$0xff] %v397
  %462 = vst [vmem:[%s3 + $0x190] sm:$0xff] %v398
  %463 = vst [vmem:[%s3 + $0x198] sm:$0xff] %v399
  %464 = vst [vmem:[%s3 + $0x1a0] sm:$0xff] %v400
  %465 = vst [vmem:[%s3 + $0x1a8] sm:$0xff] %v401
  %466 = vst [vmem:[%s3 + $0x1b0] sm:$0xff] %v402
  %467 = vst [vmem:[%s3 + $0x1b8] sm:$0xff] %v403
  %468 = vst [vmem:[%s3 + $0x1c0] sm:$0xff] %v404
  %469 = vst [vmem:[%s3 + $0x1c8] sm:$0xff] %v405
  %470 = vst [vmem:[%s3 + $0x1d0] sm:$0xff] %v406
  %471 = vst [vmem:[%s3 + $0x1d8] sm:$0xff] %v407
  %472 = vst [vmem:[%s3 + $0x1e0] sm:$0xff] %v408
  %473 = vst [vmem:[%s3 + $0x1e8] sm:$0xff] %v409
  %474 = vst [vmem:[%s3 + $0x1f0] sm:$0xff] %v410
  %475 = vst [vmem:[%s3 + $0x1f8] sm:$0xff] %v411
  // Predicated region
  $region14: #{inplace_abn_sync_forward.3} parent=0 // pred_check
    _
  $region15: #{inplace_abn_sync_forward.3} parent=0 // pred_check_branch
    %477 = sbr.rel (0) target = $region17
  $region16: #{inplace_abn_sync_forward.3} parent=0 // pred_region
    _
  $region17: #{inplace_abn_sync_forward.3} parent=0 // pred_fallthru
    _
  // Predicated region
  $region18: #{inplace_abn_sync_forward.3} parent=0 // pred_check
    _
  $region19: #{inplace_abn_sync_forward.3} parent=0 // pred_check_branch
    %479 = sbr.rel (0) target = $region21
  $region20: #{inplace_abn_sync_forward.3} parent=0 // pred_region
    _
  $region21: #{inplace_abn_sync_forward.3} parent=0 // pred_fallthru
    _

// kernel: inplace_abn_sync_forward.2
$region0: #{inplace_abn_sync_forward.2}
  #allocation0 [shape = 'u32[]', space=smem, size = 0x4, offset = 0x4, fixed_abs, tag = 'smem constant byte address 0x4 - core index']
  #allocation1 [shape = 'u32[144,128]{1,0:T(1,128)}', space=vmem, size = 0x12000, scoped, tag = 'internal scratch']
  #allocation2 [shape = 'f32[1,128]{1,0:T(1,128)}', space=vmem, size = 0x200, scoped, tag = 'scratch operand']
  #allocation3 [shape = 'f32[1,128]{1,0:T(1,128)}', space=vmem, size = 0x200, scoped, tag = 'scratch operand']
  %s0 = inlined_call_operand.vmem [shape: f32[512,128], index: 0, kind: input, shape index: {}]
  %s1 = inlined_call_operand.vmem [shape: f32[1,128], index: 1, kind: input, shape index: {}]
  %s2 = inlined_call_operand.vmem [shape: f32[1,128], index: 2, kind: input, shape index: {}]
  %s3 = inlined_call_operand.vmem [shape: f32[1,128], index: 3, kind: output, shape index: {0}]
  %s4 = inlined_call_operand.vmem [shape: f32[1,128], index: 4, kind: output, shape index: {1}]
  %5 = xla_tuple %s3, %s4
  %s6 = sld [smem:[#allocation0]]
  $region38: #{inplace_abn_sync_forward.2} parent=0
    _
  %s8 = ssub.s32 1, %s6
  %s9 = scalar_select 0, %s8, %s6
  // Predicated region
  $region2: #{inplace_abn_sync_forward.2} parent=0 // pred_check
    _
  $region3: #{inplace_abn_sync_forward.2} parent=0 // pred_check_branch
    %11 = sbr.rel (0) target = $region5
  $region4: #{inplace_abn_sync_forward.2} parent=0 // pred_region
    _
  $region5: #{inplace_abn_sync_forward.2} parent=0 // pred_fallthru
    _
  // Predicated region
  $region6: #{inplace_abn_sync_forward.2} parent=0 // pred_check
    _
  $region7: #{inplace_abn_sync_forward.2} parent=0 // pred_check_branch
    %13 = sbr.rel (0) target = $region9
  $region8: #{inplace_abn_sync_forward.2} parent=0 // pred_region
    _
  $region9: #{inplace_abn_sync_forward.2} parent=0 // pred_fallthru
    _
  // Predicated region
  $region10: #{inplace_abn_sync_forward.2} parent=0 // pred_check
    _
  $region11: #{inplace_abn_sync_forward.2} parent=0 // pred_check_branch
    %15 = sbr.rel (0) target = $region13
  $region12: #{inplace_abn_sync_forward.2} parent=0 // pred_region
    _
  $region13: #{inplace_abn_sync_forward.2} parent=0 // pred_fallthru
    _
  %p16 = scmp.eq.s32.totalorder 0, 0
  // Predicated region
  $region14: #{inplace_abn_sync_forward.2} parent=0 // pred_check
    %p17 = pneg %p16
  $region15: #{inplace_abn_sync_forward.2} parent=0 // pred_check_branch
    %19 = sbr.rel (%p17) target = $region17
  $region16: #{inplace_abn_sync_forward.2} parent=0 // pred_region
    %20 = vst [vmem:[#allocation2] sm:$0x1] 0.0
    %21 = vst [vmem:[#allocation3] sm:$0x1] 0.0
  $region17: #{inplace_abn_sync_forward.2} parent=0 // pred_fallthru
    _
  %v22 = vld [vmem:[%s0] sm:$0xff]
  %v23 = vld [vmem:[%s0 + $0x8] sm:$0xff]
  %v24 = vld [vmem:[%s0 + $0x10] sm:$0xff]
  %v25 = vld [vmem:[%s0 + $0x18] sm:$0xff]
  %v26 = vld [vmem:[%s0 + $0x20] sm:$0xff]
  %v27 = vld [vmem:[%s0 + $0x28] sm:$0xff]
  %v28 = vld [vmem:[%s0 + $0x30] sm:$0xff]
  %v29 = vld [vmem:[%s0 + $0x38] sm:$0xff]
  %v30 = vld [vmem:[%s0 + $0x40] sm:$0xff]
  %v31 = vld [vmem:[%s0 + $0x48] sm:$0xff]
  %v32 = vld [vmem:[%s0 + $0x50] sm:$0xff]
  %v33 = vld [vmem:[%s0 + $0x58] sm:$0xff]
  %v34 = vld [vmem:[%s0 + $0x60] sm:$0xff]
  %v35 = vld [vmem:[%s0 + $0x68] sm:$0xff]
  %v36 = vld [vmem:[%s0 + $0x70] sm:$0xff]
  %v37 = vld [vmem:[%s0 + $0x78] sm:$0xff]
  %v38 = vld [vmem:[%s0 + $0x80] sm:$0xff]
  %v39 = vld [vmem:[%s0 + $0x88] sm:$0xff]
  %v40 = vld [vmem:[%s0 + $0x90] sm:$0xff]
  %v41 = vld [vmem:[%s0 + $0x98] sm:$0xff]
  %v42 = vld [vmem:[%s0 + $0xa0] sm:$0xff]
  %v43 = vld [vmem:[%s0 + $0xa8] sm:$0xff]
  %v44 = vld [vmem:[%s0 + $0xb0] sm:$0xff]
  %v45 = vld [vmem:[%s0 + $0xb8] sm:$0xff]
  %v46 = vld [vmem:[%s0 + $0xc0] sm:$0xff]
  %v47 = vld [vmem:[%s0 + $0xc8] sm:$0xff]
  %v48 = vld [vmem:[%s0 + $0xd0] sm:$0xff]
  %v49 = vld [vmem:[%s0 + $0xd8] sm:$0xff]
  %v50 = vld [vmem:[%s0 + $0xe0] sm:$0xff]
  %v51 = vld [vmem:[%s0 + $0xe8] sm:$0xff]
  %v52 = vld [vmem:[%s0 + $0xf0] sm:$0xff]
  %v53 = vld [vmem:[%s0 + $0xf8] sm:$0xff]
  %v54 = vld [vmem:[%s0 + $0x100] sm:$0xff]
  %v55 = vld [vmem:[%s0 + $0x108] sm:$0xff]
  %v56 = vld [vmem:[%s0 + $0x110] sm:$0xff]
  %v57 = vld [vmem:[%s0 + $0x118] sm:$0xff]
  %v58 = vld [vmem:[%s0 + $0x120] sm:$0xff]
  %v59 = vld [vmem:[%s0 + $0x128] sm:$0xff]
  %v60 = vld [vmem:[%s0 + $0x130] sm:$0xff]
  %v61 = vld [vmem:[%s0 + $0x138] sm:$0xff]
  %v62 = vld [vmem:[%s0 + $0x140] sm:$0xff]
  %v63 = vld [vmem:[%s0 + $0x148] sm:$0xff]
  %v64 = vld [vmem:[%s0 + $0x150] sm:$0xff]
  %v65 = vld [vmem:[%s0 + $0x158] sm:$0xff]
  %v66 = vld [vmem:[%s0 + $0x160] sm:$0xff]
  %v67 = vld [vmem:[%s0 + $0x168] sm:$0xff]
  %v68 = vld [vmem:[%s0 + $0x170] sm:$0xff]
  %v69 = vld [vmem:[%s0 + $0x178] sm:$0xff]
  %v70 = vld [vmem:[%s0 + $0x180] sm:$0xff]
  %v71 = vld [vmem:[%s0 + $0x188] sm:$0xff]
  %v72 = vld [vmem:[%s0 + $0x190] sm:$0xff]
  %v73 = vld [vmem:[%s0 + $0x198] sm:$0xff]
  %v74 = vld [vmem:[%s0 + $0x1a0] sm:$0xff]
  %v75 = vld [vmem:[%s0 + $0x1a8] sm:$0xff]
  %v76 = vld [vmem:[%s0 + $0x1b0] sm:$0xff]
  %v77 = vld [vmem:[%s0 + $0x1b8] sm:$0xff]
  %v78 = vld [vmem:[%s0 + $0x1c0] sm:$0xff]
  %v79 = vld [vmem:[%s0 + $0x1c8] sm:$0xff]
  %v80 = vld [vmem:[%s0 + $0x1d0] sm:$0xff]
  %v81 = vld [vmem:[%s0 + $0x1d8] sm:$0xff]
  %v82 = vld [vmem:[%s0 + $0x1e0] sm:$0xff]
  %v83 = vld [vmem:[%s0 + $0x1e8] sm:$0xff]
  %v84 = vld [vmem:[%s0 + $0x1f0] sm:$0xff]
  %v85 = vld [vmem:[%s0 + $0x1f8] sm:$0xff]
  %v86 = vld [vmem:[#allocation2] sm:$0x1]
  %v87 = vadd.f32 %v22, %v23
  %v88 = vadd.f32 %v87, %v24
  %v89 = vadd.f32 %v88, %v25
  %v90 = vadd.f32 %v89, %v26
  %v91 = vadd.f32 %v90, %v27
  %v92 = vadd.f32 %v91, %v28
  %v93 = vadd.f32 %v92, %v29
  %v94 = vadd.f32 %v93, %v30
  %v95 = vadd.f32 %v94, %v31
  %v96 = vadd.f32 %v95, %v32
  %v97 = vadd.f32 %v96, %v33
  %v98 = vadd.f32 %v97, %v34
  %v99 = vadd.f32 %v98, %v35
  %v100 = vadd.f32 %v99, %v36
  %v101 = vadd.f32 %v100, %v37
  %v102 = vadd.f32 %v101, %v38
  %v103 = vadd.f32 %v102, %v39
  %v104 = vadd.f32 %v103, %v40
  %v105 = vadd.f32 %v104, %v41
  %v106 = vadd.f32 %v105, %v42
  %v107 = vadd.f32 %v106, %v43
  %v108 = vadd.f32 %v107, %v44
  %v109 = vadd.f32 %v108, %v45
  %v110 = vadd.f32 %v109, %v46
  %v111 = vadd.f32 %v110, %v47
  %v112 = vadd.f32 %v111, %v48
  %v113 = vadd.f32 %v112, %v49
  %v114 = vadd.f32 %v113, %v50
  %v115 = vadd.f32 %v114, %v51
  %v116 = vadd.f32 %v115, %v52
  %v117 = vadd.f32 %v116, %v53
  %v118 = vadd.f32 %v117, %v54
  %v119 = vadd.f32 %v118, %v55
  %v120 = vadd.f32 %v119, %v56
  %v121 = vadd.f32 %v120, %v57
  %v122 = vadd.f32 %v121, %v58
  %v123 = vadd.f32 %v122, %v59
  %v124 = vadd.f32 %v123, %v60
  %v125 = vadd.f32 %v124, %v61
  %v126 = vadd.f32 %v125, %v62
  %v127 = vadd.f32 %v126, %v63
  %v128 = vadd.f32 %v127, %v64
  %v129 = vadd.f32 %v128, %v65
  %v130 = vadd.f32 %v129, %v66
  %v131 = vadd.f32 %v130, %v67
  %v132 = vadd.f32 %v131, %v68
  %v133 = vadd.f32 %v132, %v69
  %v134 = vadd.f32 %v133, %v70
  %v135 = vadd.f32 %v134, %v71
  %v136 = vadd.f32 %v135, %v72
  %v137 = vadd.f32 %v136, %v73
  %v138 = vadd.f32 %v137, %v74
  %v139 = vadd.f32 %v138, %v75
  %v140 = vadd.f32 %v139, %v76
  %v141 = vadd.f32 %v140, %v77
  %v142 = vadd.f32 %v141, %v78
  %v143 = vadd.f32 %v142, %v79
  %v144 = vadd.f32 %v143, %v80
  %v145 = vadd.f32 %v144, %v81
  %v146 = vadd.f32 %v145, %v82
  %v147 = vadd.f32 %v146, %v83
  %v148 = vadd.f32 %v147, %v84
  %v149 = vadd.f32 %v148, %v85
  %v150 = vrot.slane %v149, 4
  %v151 = vadd.f32 %v149, %v150
  %v152 = vrot.slane %v151, 2
  %v153 = vadd.f32 %v151, %v152
  %v154 = vrot.slane %v153, 1
  %v155 = vadd.f32 %v153, %v154
  %v156 = vadd.f32 %v86, %v155
  %157 = vst [vmem:[#allocation2] sm:$0x1] %v156
  %v158 = vld [vmem:[#allocation3] sm:$0x1]
  %v159 = vmul.f32 %v22, %v22
  %v160 = vmul.f32 %v23, %v23
  %v161 = vmul.f32 %v24, %v24
  %v162 = vmul.f32 %v25, %v25
  %v163 = vmul.f32 %v26, %v26
  %v164 = vmul.f32 %v27, %v27
  %v165 = vmul.f32 %v28, %v28
  %v166 = vmul.f32 %v29, %v29
  %v167 = vmul.f32 %v30, %v30
  %v168 = vmul.f32 %v31, %v31
  %v169 = vmul.f32 %v32, %v32
  %v170 = vmul.f32 %v33, %v33
  %v171 = vmul.f32 %v34, %v34
  %v172 = vmul.f32 %v35, %v35
  %v173 = vmul.f32 %v36, %v36
  %v174 = vmul.f32 %v37, %v37
  %v175 = vmul.f32 %v38, %v38
  %v176 = vmul.f32 %v39, %v39
  %v177 = vmul.f32 %v40, %v40
  %v178 = vmul.f32 %v41, %v41
  %v179 = vmul.f32 %v42, %v42
  %v180 = vmul.f32 %v43, %v43
  %v181 = vmul.f32 %v44, %v44
  %v182 = vmul.f32 %v45, %v45
  %v183 = vmul.f32 %v46, %v46
  %v184 = vmul.f32 %v47, %v47
  %v185 = vmul.f32 %v48, %v48
  %v186 = vmul.f32 %v49, %v49
  %v187 = vmul.f32 %v50, %v50
  %v188 = vmul.f32 %v51, %v51
  %v189 = vmul.f32 %v52, %v52
  %v190 = vmul.f32 %v53, %v53
  %v191 = vmul.f32 %v54, %v54
  %v192 = vmul.f32 %v55, %v55
  %v193 = vmul.f32 %v56, %v56
  %v194 = vmul.f32 %v57, %v57
  %v195 = vmul.f32 %v58, %v58
  %v196 = vmul.f32 %v59, %v59
  %v197 = vmul.f32 %v60, %v60
  %v198 = vmul.f32 %v61, %v61
  %v199 = vmul.f32 %v62, %v62
  %v200 = vmul.f32 %v63, %v63
  %v201 = vmul.f32 %v64, %v64
  %v202 = vmul.f32 %v65, %v65
  %v203 = vmul.f32 %v66, %v66
  %v204 = vmul.f32 %v67, %v67
  %v205 = vmul.f32 %v68, %v68
  %v206 = vmul.f32 %v69, %v69
  %v207 = vmul.f32 %v70, %v70
  %v208 = vmul.f32 %v71, %v71
  %v209 = vmul.f32 %v72, %v72
  %v210 = vmul.f32 %v73, %v73
  %v211 = vmul.f32 %v74, %v74
  %v212 = vmul.f32 %v75, %v75
  %v213 = vmul.f32 %v76, %v76
  %v214 = vmul.f32 %v77, %v77
  %v215 = vmul.f32 %v78, %v78
  %v216 = vmul.f32 %v79, %v79
  %v217 = vmul.f32 %v80, %v80
  %v218 = vmul.f32 %v81, %v81
  %v219 = vmul.f32 %v82, %v82
  %v220 = vmul.f32 %v83, %v83
  %v221 = vmul.f32 %v84, %v84
  %v222 = vmul.f32 %v85, %v85
  %v223 = vadd.f32 %v159, %v160
  %v224 = vadd.f32 %v223, %v161
  %v225 = vadd.f32 %v224, %v162
  %v226 = vadd.f32 %v225, %v163
  %v227 = vadd.f32 %v226, %v164
  %v228 = vadd.f32 %v227, %v165
  %v229 = vadd.f32 %v228, %v166
  %v230 = vadd.f32 %v229, %v167
  %v231 = vadd.f32 %v230, %v168
  %v232 = vadd.f32 %v231, %v169
  %v233 = vadd.f32 %v232, %v170
  %v234 = vadd.f32 %v233, %v171
  %v235 = vadd.f32 %v234, %v172
  %v236 = vadd.f32 %v235, %v173
  %v237 = vadd.f32 %v236, %v174
  %v238 = vadd.f32 %v237, %v175
  %v239 = vadd.f32 %v238, %v176
  %v240 = vadd.f32 %v239, %v177
  %v241 = vadd.f32 %v240, %v178
  %v242 = vadd.f32 %v241, %v179
  %v243 = vadd.f32 %v242, %v180
  %v244 = vadd.f32 %v243, %v181
  %v245 = vadd.f32 %v244, %v182
  %v246 = vadd.f32 %v245, %v183
  %v247 = vadd.f32 %v246, %v184
  %v248 = vadd.f32 %v247, %v185
  %v249 = vadd.f32 %v248, %v186
  %v250 = vadd.f32 %v249, %v187
  %v251 = vadd.f32 %v250, %v188
  %v252 = vadd.f32 %v251, %v189
  %v253 = vadd.f32 %v252, %v190
  %v254 = vadd.f32 %v253, %v191
  %v255 = vadd.f32 %v254, %v192
  %v256 = vadd.f32 %v255, %v193
  %v257 = vadd.f32 %v256, %v194
  %v258 = vadd.f32 %v257, %v195
  %v259 = vadd.f32 %v258, %v196
  %v260 = vadd.f32 %v259, %v197
  %v261 = vadd.f32 %v260, %v198
  %v262 = vadd.f32 %v261, %v199
  %v263 = vadd.f32 %v262, %v200
  %v264 = vadd.f32 %v263, %v201
  %v265 = vadd.f32 %v264, %v202
  %v266 = vadd.f32 %v265, %v203
  %v267 = vadd.f32 %v266, %v204
  %v268 = vadd.f32 %v267, %v205
  %v269 = vadd.f32 %v268, %v206
  %v270 = vadd.f32 %v269, %v207
  %v271 = vadd.f32 %v270, %v208
  %v272 = vadd.f32 %v271, %v209
  %v273 = vadd.f32 %v272, %v210
  %v274 = vadd.f32 %v273, %v211
  %v275 = vadd.f32 %v274, %v212
  %v276 = vadd.f32 %v275, %v213
  %v277 = vadd.f32 %v276, %v214
  %v278 = vadd.f32 %v277, %v215
  %v279 = vadd.f32 %v278, %v216
  %v280 = vadd.f32 %v279, %v217
  %v281 = vadd.f32 %v280, %v218
  %v282 = vadd.f32 %v281, %v219
  %v283 = vadd.f32 %v282, %v220
  %v284 = vadd.f32 %v283, %v221
  %v285 = vadd.f32 %v284, %v222
  %v286 = vrot.slane %v285, 4
  %v287 = vadd.f32 %v285, %v286
  %v288 = vrot.slane %v287, 2
  %v289 = vadd.f32 %v287, %v288
  %v290 = vrot.slane %v289, 1
  %v291 = vadd.f32 %v289, %v290
  %v292 = vadd.f32 %v158, %v291
  %293 = vst [vmem:[#allocation3] sm:$0x1] %v292
  // Predicated region
  $region18: #{inplace_abn_sync_forward.2} parent=0 // pred_check
    %p294 = pneg %p16
  $region19: #{inplace_abn_sync_forward.2} parent=0 // pred_check_branch
    %296 = sbr.rel (%p294) target = $region21
  $region20: #{inplace_abn_sync_forward.2} parent=0 // pred_region
    %v297 = vld [vmem:[#allocation2] sm:$0x1]
    %v298 = vmul.f32 %v297, 0.001953125
    %v299 = vld [vmem:[#allocation3] sm:$0x1]
    %v300 = vmul.f32 %v299, 0.001953125
    %v301 = vmul.f32 %v298, %v298
    %v302 = vsub.f32 %v300, %v301
    %v303 = vld [vmem:[%s1] sm:$0x1]
    %v304 = vadd.f32 %v302, 1e-05
    %v305 = vrsqrt.pop %v304
    %v306 = vmul.f32 %v303, %v305
    %307 = vst [vmem:[%s3] sm:$0x1] %v306
    %v308 = vld [vmem:[%s2] sm:$0x1]
    %v309 = vmul.f32 %v298, %v306
    %v310 = vsub.f32 %v308, %v309
    %311 = vst [vmem:[%s4] sm:$0x1] %v310
  $region21: #{inplace_abn_sync_forward.2} parent=0 // pred_fallthru
    _
  // Predicated region
  $region22: #{inplace_abn_sync_forward.2} parent=0 // pred_check
    _
  $region23: #{inplace_abn_sync_forward.2} parent=0 // pred_check_branch
    %313 = sbr.rel (0) target = $region25
  $region24: #{inplace_abn_sync_forward.2} parent=0 // pred_region
    _
  $region25: #{inplace_abn_sync_forward.2} parent=0 // pred_fallthru
    _
  // Predicated region
  $region26: #{inplace_abn_sync_forward.2} parent=0 // pred_check
    _
  $region27: #{inplace_abn_sync_forward.2} parent=0 // pred_check_branch
    %315 = sbr.rel (0) target = $region29
  $region28: #{inplace_abn_sync_forward.2} parent=0 // pred_region
    _
  $region29: #{inplace_abn_sync_forward.2} parent=0 // pred_fallthru
    _
  // Predicated region
  $region30: #{inplace_abn_sync_forward.2} parent=0 // pred_check
    _
  $region31: #{inplace_abn_sync_forward.2} parent=0 // pred_check_branch
    %317 = sbr.rel (0) target = $region33
  $region32: #{inplace_abn_sync_forward.2} parent=0 // pred_region
    _
  $region33: #{inplace_abn_sync_forward.2} parent=0 // pred_fallthru
    _
  // Predicated region
  $region34: #{inplace_abn_sync_forward.2} parent=0 // pred_check
    _
  $region35: #{inplace_abn_sync_forward.2} parent=0 // pred_check_branch
    %319 = sbr.rel (0) target = $region37
  $region36: #{inplace_abn_sync_forward.2} parent=0 // pred_region
    _
  $region37: #{inplace_abn_sync_forward.2} parent=0 // pred_fallthru
    _

</llo_original>
